<compile_context>
chip_gen: v6e
topology: v6e:2x2x1
jax: 0.10.0
libtpu: 0.0.40
codegen_flags: <defaults>
</compile_context>

<pallas_src>
import functools

import jax
import jax.numpy as jnp
from jax import lax
from jax.experimental import pallas as pl
from jax.experimental.pallas import tpu as pltpu


# ---------------------------------------------------------------------------
# Generation-aware tuning knobs
# ---------------------------------------------------------------------------
def _device_kind():
    try:
        return jax.devices()[0].device_kind.lower()
    except Exception:
        return ""


def _gen_params():
    """Return (max_tile, vmem_limit_bytes or None) for the local TPU generation."""
    kind = _device_kind()
    if "v7" in kind:        # 64 MiB VMEM per TC -> smaller tiles, ~25% headroom
        return 256, 48 * 1024 * 1024
    if "v6" in kind:        # 128 MiB VMEM -> big tiles, raise scoped limit
        return 512, 100 * 1024 * 1024
    if "v5 lite" in kind or "v5e" in kind or "v5lite" in kind:
        return 256, 64 * 1024 * 1024   # 128x128 MXU, 1 vst slot -> modest tiles
    if "v5" in kind:        # v5p
        return 512, 100 * 1024 * 1024
    return 256, None        # unknown / older generation: conservative defaults


def _pick_tile(n, max_tile):
    """Largest lane/sublane-friendly tile (<= max_tile) dividing n, else full n."""
    for t in (512, 256, 128):
        if t <= max_tile and n >= t and n % t == 0:
            return t
    return n


def _compiler_params(dim_sem, vmem_limit):
    kwargs = dict(dimension_semantics=dim_sem)
    if vmem_limit is not None:
        kwargs["vmem_limit_bytes"] = vmem_limit
    return pltpu.CompilerParams(**kwargs)


def _rep_lanes(x, n):
    """x: (rows, L) lane-replicated value -> (rows, n) with same per-row value."""
    r = x.shape[-1]
    if n == r:
        return x
    if n % r == 0:
        return jnp.tile(x, (1, n // r))       # full-vreg tile, no lane broadcast
    if n < r:
        return x[:, :n]                       # prefix slice of replicated lanes
    reps = pl.cdiv(n, r)
    return jnp.tile(x, (1, reps))[:, :n]


# ---------------------------------------------------------------------------
# Kernel 1: fused QKV projection (one matmul against [Wq*scale | Wk | Wv])
# ---------------------------------------------------------------------------
def _qkv_proj_kernel(x_ref, w_ref, q_ref, k_ref, v_ref, *, d_k):
    x = x_ref[0]                                             # (tr, D), native dtype
    # Single MXU contraction over d_model for all three projections.
    y = jnp.dot(x, w_ref[...], preferred_element_type=jnp.float32)  # (tr, 2dk+D) f32
    q_ref[0] = y[:, :d_k].astype(q_ref.dtype)
    k_ref[0] = y[:, d_k:2 * d_k].astype(k_ref.dtype)
    # With d_k=64 the V columns start at lane 128 -> lane-tile-aligned slice/store.
    v_ref[0] = y[:, 2 * d_k:].astype(v_ref.dtype)


def qkv_projection(x, w_cat, d_k, *, max_tile, vmem_limit):
    """x: (B, S, D); w_cat: (D, 2*d_k + D) -> (q, k, v)."""
    B, S, D = x.shape
    cols = w_cat.shape[1]
    tr = _pick_tile(S, max_tile)
    itemsize = jnp.dtype(x.dtype).itemsize

    flops = 2 * B * S * D * cols
    bytes_accessed = (x.size + w_cat.size + B * S * cols) * itemsize

    # TODO(synk): for very large d_model (>= ~2-4K f32) on v7x, tile w_cat over
    # its output-column (and contraction) dim instead of keeping it fully
    # VMEM-resident, or store it in bf16.
    kernel = functools.partial(_qkv_proj_kernel, d_k=d_k)

    return pl.pallas_call(
        kernel,
        out_shape=(
            jax.ShapeDtypeStruct((B, S, d_k), x.dtype),
            jax.ShapeDtypeStruct((B, S, d_k), x.dtype),
            jax.ShapeDtypeStruct((B, S, D), x.dtype),
        ),
        grid_spec=pltpu.PrefetchScalarGridSpec(
            num_scalar_prefetch=0,
            grid=(B, S // tr),
            in_specs=[
                pl.BlockSpec((1, tr, D), lambda b, i: (b, i, 0)),   # x row tile
                pl.BlockSpec((D, cols), lambda b, i: (0, 0)),       # fused weights
            ],
            out_specs=(
                pl.BlockSpec((1, tr, d_k), lambda b, i: (b, i, 0)),
                pl.BlockSpec((1, tr, d_k), lambda b, i: (b, i, 0)),
                pl.BlockSpec((1, tr, D), lambda b, i: (b, i, 0)),
            ),
        ),
        compiler_params=_compiler_params(("parallel", "parallel"), vmem_limit),
        cost_estimate=pl.CostEstimate(
            flops=flops, transcendentals=0, bytes_accessed=bytes_accessed),
    )(x, w_cat)


# ---------------------------------------------------------------------------
# Kernel 2: flash-style attention with online softmax (scale folded into Q)
# ---------------------------------------------------------------------------
def _flash_kernel(q_ref, k_ref, v_ref, o_ref, m_sc, l_sc, acc_sc):
    kv = pl.program_id(2)

    @pl.when(kv == 0)
    def _init():
        m_sc[...] = jnp.full(m_sc.shape, -jnp.inf, dtype=m_sc.dtype)
        l_sc[...] = jnp.zeros_like(l_sc)
        acc_sc[...] = jnp.zeros_like(acc_sc)

    q = q_ref[0]                                          # (tq, d_k)  (pre-scaled)
    k = k_ref[0]                                          # (tk, d_k)
    v = v_ref[0]                                          # (tk, D)

    # QK^T: contract the last dim of both operands -> no transpose of k.
    s = lax.dot_general(q, k, (((1,), (1,)), ((), ())),
                        preferred_element_type=jnp.float32)       # (tq, tk) f32

    # Online (streaming) softmax in f32 with lane-replicated (tq, 128) stats.
    m_prev = m_sc[...]                                    # (tq, 128)
    l_prev = l_sc[...]                                    # (tq, 128)
    m_cur = jnp.max(s, axis=-1, keepdims=True)            # (tq, 1)
    m_next = jnp.maximum(m_prev, m_cur)                   # (tq, 128), replicated
    alpha = jnp.exp(m_prev - m_next)                      # (tq, 128)
    p = jnp.exp(s - _rep_lanes(m_next, s.shape[-1]))      # (tq, tk)
    l_cur = jnp.sum(p, axis=-1, keepdims=True)            # (tq, 1)
    l_sc[...] = alpha * l_prev + l_cur
    m_sc[...] = m_next

    d_out = acc_sc.shape[-1]
    acc_sc[...] = acc_sc[...] * _rep_lanes(alpha, d_out) + jnp.dot(
        p.astype(v.dtype), v, preferred_element_type=jnp.float32)

    @pl.when(kv == pl.num_programs(2) - 1)
    def _finalize():
        inv_l = pl.reciprocal(l_sc[...], approx=False)    # exact; once per q-tile
        o_ref[0] = (acc_sc[...] * _rep_lanes(inv_l, d_out)).astype(o_ref.dtype)


def flash_attention(q, k, v, *, max_tile, vmem_limit):
    """q/k: (B, S, d_k) with scale folded into q; v: (B, S, D) -> (B, S, D)."""
    B, S, dk = q.shape
    D = v.shape[-1]
    tq = _pick_tile(S, max_tile)
    tk = _pick_tile(S, max_tile)
    nq = S // tq
    itemsize = jnp.dtype(q.dtype).itemsize

    flops = 2 * B * S * S * (dk + D)
    transcendentals = B * S * S
    # K/V are re-fetched once per q-tile; Q and the output move once.
    bytes_accessed = (q.size + nq * (k.size + v.size) + B * S * D) * itemsize

    stat_lanes = 128   # lane-replicated m/l scratch width

    return pl.pallas_call(
        _flash_kernel,
        out_shape=jax.ShapeDtypeStruct((B, S, D), q.dtype),
        grid_spec=pltpu.PrefetchScalarGridSpec(
            num_scalar_prefetch=0,
            grid=(B, nq, S // tk),                         # kv reduction axis last
            in_specs=[
                pl.BlockSpec((1, tq, dk), lambda b, i, j: (b, i, 0)),   # Q tile
                pl.BlockSpec((1, tk, dk), lambda b, i, j: (b, j, 0)),   # K tile
                pl.BlockSpec((1, tk, D), lambda b, i, j: (b, j, 0)),    # V tile
            ],
            out_specs=pl.BlockSpec((1, tq, D), lambda b, i, j: (b, i, 0)),
            scratch_shapes=[
                pltpu.VMEM((tq, stat_lanes), jnp.float32),   # running max  m
                pltpu.VMEM((tq, stat_lanes), jnp.float32),   # running sum  l
                pltpu.VMEM((tq, D), jnp.float32),            # accumulator
            ],
        ),
        compiler_params=_compiler_params(
            ("parallel", "parallel", "arbitrary"), vmem_limit),
        cost_estimate=pl.CostEstimate(
            flops=flops, transcendentals=transcendentals,
            bytes_accessed=bytes_accessed),
    )(q, k, v)


# ---------------------------------------------------------------------------
# Module forward
# ---------------------------------------------------------------------------
@functools.partial(jax.jit, static_argnames=("d_k",))
def attention_forward(x, wq, wk, wv, d_k):
    max_tile, vmem_limit = _gen_params()
    scale = 1.0 / float(d_k) ** 0.5
    # Fold the 1/sqrt(d_k) softmax scale into Wq and fuse all projection
    # weights into a single lane-dense matmul operand.
    w_cat = jnp.concatenate(
        [(wq * scale).astype(x.dtype), wk.astype(x.dtype), wv.astype(x.dtype)],
        axis=1)                                            # (D, 2*d_k + D)
    q, k, v = qkv_projection(x, w_cat, d_k, max_tile=max_tile, vmem_limit=vmem_limit)
    return flash_attention(q, k, v, max_tile=max_tile, vmem_limit=vmem_limit)


def attention_reference(x, wq, wk, wv, d_k):
    q = jnp.einsum("bsd,dk->bsk", x, wq)
    k = jnp.einsum("bsd,dk->bsk", x, wk)
    v = jnp.einsum("bsd,de->bse", x, wv)
    scores = jnp.einsum("bqk,bsk->bqs", q, k) / (d_k ** 0.5)
    p = jax.nn.softmax(scores, axis=2)
    return jnp.einsum("bqs,bse->bqe", p, v)


if __name__ == "__main__":
    B, S, d_model, d_k = 2, 8, 32, 64

    key = jax.random.PRNGKey(0)
    kx, kq, kk, kv_ = jax.random.split(key, 4)

    x = jax.random.normal(kx, (B, S, d_model), dtype=jnp.float32)
    # Weights stored as (in_features, out_features) == PyTorch weight transposed
    # (bias=False in the module).
    wq = jax.random.normal(kq, (d_model, d_k), dtype=jnp.float32) * (d_model ** -0.5)
    wk = jax.random.normal(kk, (d_model, d_k), dtype=jnp.float32) * (d_model ** -0.5)
    wv = jax.random.normal(kv_, (d_model, d_model), dtype=jnp.float32) * (d_model ** -0.5)

    out = jax.block_until_ready(attention_forward(x, wq, wk, wv, d_k))

    ref = attention_reference(x, wq, wk, wv, d_k)
    assert out.shape == (B, S, d_model)
    assert jnp.allclose(out, ref, atol=2e-3, rtol=2e-3), "mismatch vs reference"

    print("KERNEL_OK")
</pallas_src>

<mosaic_0001>
module attributes {stable_mosaic.version = 11 : i64} {
  func.func @_qkv_proj_kernel(%arg0: i32, %arg1: i32, %arg2: memref<1x8x32xf32, #tpu.memory_space<vmem>>, %arg3: memref<32x160xf32, #tpu.memory_space<vmem>>, %arg4: memref<1x8x64xf32, #tpu.memory_space<vmem>>, %arg5: memref<1x8x64xf32, #tpu.memory_space<vmem>>, %arg6: memref<1x8x32xf32, #tpu.memory_space<vmem>>) attributes {dimension_semantics = [#tpu.dimension_semantics<parallel>, #tpu.dimension_semantics<parallel>], iteration_bounds = array<i64: 2, 1>, scalar_prefetch = 0 : i64, scratch_operands = 0 : i64, tpu.core_type = #tpu.core_type<tc>, window_params = [{transform_indices = @transform_0, window_bounds = array<i64: 1, 8, 32>}, {pipeline_mode = #tpu.pipeline_mode<synchronous>, transform_indices = @transform_1, window_bounds = array<i64: 32, 160>}, {transform_indices = @transform_2, window_bounds = array<i64: 1, 8, 64>}, {transform_indices = @transform_3, window_bounds = array<i64: 1, 8, 64>}, {transform_indices = @transform_4, window_bounds = array<i64: 1, 8, 32>}]} {
    %c0 = arith.constant 0 : index
    %c0_0 = arith.constant 0 : index
    %c0_1 = arith.constant 0 : index
    %0 = vector.load %arg2[%c0, %c0_0, %c0_1] : memref<1x8x32xf32, #tpu.memory_space<vmem>>, vector<1x8x32xf32>
    %1 = vector.shape_cast %0 : vector<1x8x32xf32> to vector<8x32xf32>
    %c0_2 = arith.constant 0 : index
    %c0_3 = arith.constant 0 : index
    %2 = vector.load %arg3[%c0_2, %c0_3] : memref<32x160xf32, #tpu.memory_space<vmem>>, vector<32x160xf32>
    %cst = arith.constant dense<0.000000e+00> : vector<8x160xf32>
    %3 = tpu.matmul %1, %2, %cst {dimension_numbers = #tpu.dot_dimension_numbers<[1], [0], [0], [1], [0, 0, 1, 1], [], []>} : vector<8x32xf32>, vector<32x160xf32>, vector<8x160xf32> -> vector<8x160xf32>
    %4 = vector.extract_strided_slice %3 {offsets = [0, 0], sizes = [8, 64], strides = [1, 1]} : vector<8x160xf32> to vector<8x64xf32>
    %c0_4 = arith.constant 0 : index
    %c0_5 = arith.constant 0 : index
    %c0_6 = arith.constant 0 : index
    %5 = vector.load %arg4[%c0_4, %c0_5, %c0_6] : memref<1x8x64xf32, #tpu.memory_space<vmem>>, vector<1x8x64xf32>
    %6 = vector.shape_cast %5 : vector<1x8x64xf32> to vector<8x64xf32>
    %7 = vector.shape_cast %4 : vector<8x64xf32> to vector<1x8x64xf32>
    tpu.vector_store %arg4[%c0_4, %c0_5, %c0_6], %7 {strides = array<i32>} : memref<1x8x64xf32, #tpu.memory_space<vmem>>, vector<1x8x64xf32>,
    %8 = vector.extract_strided_slice %3 {offsets = [0, 64], sizes = [8, 64], strides = [1, 1]} : vector<8x160xf32> to vector<8x64xf32>
    %c0_7 = arith.constant 0 : index
    %c0_8 = arith.constant 0 : index
    %c0_9 = arith.constant 0 : index
    %9 = vector.load %arg5[%c0_7, %c0_8, %c0_9] : memref<1x8x64xf32, #tpu.memory_space<vmem>>, vector<1x8x64xf32>
    %10 = vector.shape_cast %9 : vector<1x8x64xf32> to vector<8x64xf32>
    %11 = vector.shape_cast %8 : vector<8x64xf32> to vector<1x8x64xf32>
    tpu.vector_store %arg5[%c0_7, %c0_8, %c0_9], %11 {strides = array<i32>} : memref<1x8x64xf32, #tpu.memory_space<vmem>>, vector<1x8x64xf32>,
    %12 = vector.extract_strided_slice %3 {offsets = [0, 128], sizes = [8, 32], strides = [1, 1]} : vector<8x160xf32> to vector<8x32xf32>
    %c0_10 = arith.constant 0 : index
    %c0_11 = arith.constant 0 : index
    %c0_12 = arith.constant 0 : index
    %13 = vector.load %arg6[%c0_10, %c0_11, %c0_12] : memref<1x8x32xf32, #tpu.memory_space<vmem>>, vector<1x8x32xf32>
    %14 = vector.shape_cast %13 : vector<1x8x32xf32> to vector<8x32xf32>
    %15 = vector.shape_cast %12 : vector<8x32xf32> to vector<1x8x32xf32>
    tpu.vector_store %arg6[%c0_10, %c0_11, %c0_12], %15 {strides = array<i32>} : memref<1x8x32xf32, #tpu.memory_space<vmem>>, vector<1x8x32xf32>,
    return
  }
  func.func @transform_0(%arg0: i32, %arg1: i32) -> (i32, i32, i32) {
    %c0_i32 = arith.constant 0 : i32
    %c0_i32_0 = arith.constant 0 : i32
    return %arg0, %arg1, %c0_i32 : i32, i32, i32
  }
  func.func @transform_1(%arg0: i32, %arg1: i32) -> (i32, i32) {
    %c0_i32 = arith.constant 0 : i32
    %c0_i32_0 = arith.constant 0 : i32
    %c0_i32_1 = arith.constant 0 : i32
    return %c0_i32, %c0_i32_0 : i32, i32
  }
  func.func @transform_2(%arg0: i32, %arg1: i32) -> (i32, i32, i32) {
    %c0_i32 = arith.constant 0 : i32
    %c0_i32_0 = arith.constant 0 : i32
    return %arg0, %arg1, %c0_i32 : i32, i32, i32
  }
  func.func @transform_3(%arg0: i32, %arg1: i32) -> (i32, i32, i32) {
    %c0_i32 = arith.constant 0 : i32
    %c0_i32_0 = arith.constant 0 : i32
    return %arg0, %arg1, %c0_i32 : i32, i32, i32
  }
  func.func @transform_4(%arg0: i32, %arg1: i32) -> (i32, i32, i32) {
    %c0_i32 = arith.constant 0 : i32
    %c0_i32_0 = arith.constant 0 : i32
    return %arg0, %arg1, %c0_i32 : i32, i32, i32
  }
}

module attributes {stable_mosaic.version = 11 : i64} {
  func.func @_flash_kernel(%arg0: i32, %arg1: i32, %arg2: i32, %arg3: memref<1x8x64xf32, #tpu.memory_space<vmem>>, %arg4: memref<1x8x64xf32, #tpu.memory_space<vmem>>, %arg5: memref<1x8x32xf32, #tpu.memory_space<vmem>>, %arg6: memref<1x8x32xf32, #tpu.memory_space<vmem>>, %arg7: memref<8x128xf32, #tpu.memory_space<vmem>>, %arg8: memref<8x128xf32, #tpu.memory_space<vmem>>, %arg9: memref<8x32xf32, #tpu.memory_space<vmem>>) attributes {dimension_semantics = [#tpu.dimension_semantics<parallel>, #tpu.dimension_semantics<parallel>, #tpu.dimension_semantics<arbitrary>], iteration_bounds = array<i64: 2, 1, 1>, scalar_prefetch = 0 : i64, scratch_operands = 3 : i64, tpu.core_type = #tpu.core_type<tc>, window_params = [{transform_indices = @transform_0, window_bounds = array<i64: 1, 8, 64>}, {transform_indices = @transform_1, window_bounds = array<i64: 1, 8, 64>}, {transform_indices = @transform_2, window_bounds = array<i64: 1, 8, 32>}, {transform_indices = @transform_3, window_bounds = array<i64: 1, 8, 32>}]} {
    %c0_i32 = arith.constant 0 : i32
    %0 = arith.cmpi eq, %arg2, %c0_i32 : i32
    %1 = arith.extui %0 : i1 to i32
    %c0_i32_0 = arith.constant 0 : i32
    %2 = arith.cmpi ne, %1, %c0_i32_0 : i32
    scf.if %2 {
      %cst_26 = arith.constant 0xFF800000 : f32
      %37 = vector.broadcast %cst_26 : f32 to vector<8x128xf32>
      %c0_27 = arith.constant 0 : index
      %c0_28 = arith.constant 0 : index
      %38 = vector.load %arg7[%c0_27, %c0_28] : memref<8x128xf32, #tpu.memory_space<vmem>>, vector<8x128xf32>
      tpu.vector_store %arg7[%c0_27, %c0_28], %37 {strides = array<i32>} : memref<8x128xf32, #tpu.memory_space<vmem>>, vector<8x128xf32>,
      %cst_29 = arith.constant 0.000000e+00 : f32
      %39 = vector.broadcast %cst_29 : f32 to vector<8x128xf32>
      %c0_30 = arith.constant 0 : index
      %c0_31 = arith.constant 0 : index
      %40 = vector.load %arg8[%c0_30, %c0_31] : memref<8x128xf32, #tpu.memory_space<vmem>>, vector<8x128xf32>
      tpu.vector_store %arg8[%c0_30, %c0_31], %39 {strides = array<i32>} : memref<8x128xf32, #tpu.memory_space<vmem>>, vector<8x128xf32>,
      %cst_32 = arith.constant 0.000000e+00 : f32
      %41 = vector.broadcast %cst_32 : f32 to vector<8x32xf32>
      %c0_33 = arith.constant 0 : index
      %c0_34 = arith.constant 0 : index
      %42 = vector.load %arg9[%c0_33, %c0_34] : memref<8x32xf32, #tpu.memory_space<vmem>>, vector<8x32xf32>
      tpu.vector_store %arg9[%c0_33, %c0_34], %41 {strides = array<i32>} : memref<8x32xf32, #tpu.memory_space<vmem>>, vector<8x32xf32>,
    } else {
    }
    %c0 = arith.constant 0 : index
    %c0_1 = arith.constant 0 : index
    %c0_2 = arith.constant 0 : index
    %3 = vector.load %arg3[%c0, %c0_1, %c0_2] : memref<1x8x64xf32, #tpu.memory_space<vmem>>, vector<1x8x64xf32>
    %4 = vector.shape_cast %3 : vector<1x8x64xf32> to vector<8x64xf32>
    %c0_3 = arith.constant 0 : index
    %c0_4 = arith.constant 0 : index
    %c0_5 = arith.constant 0 : index
    %5 = vector.load %arg4[%c0_3, %c0_4, %c0_5] : memref<1x8x64xf32, #tpu.memory_space<vmem>>, vector<1x8x64xf32>
    %6 = vector.shape_cast %5 : vector<1x8x64xf32> to vector<8x64xf32>
    %c0_6 = arith.constant 0 : index
    %c0_7 = arith.constant 0 : index
    %c0_8 = arith.constant 0 : index
    %7 = vector.load %arg5[%c0_6, %c0_7, %c0_8] : memref<1x8x32xf32, #tpu.memory_space<vmem>>, vector<1x8x32xf32>
    %8 = vector.shape_cast %7 : vector<1x8x32xf32> to vector<8x32xf32>
    %cst = arith.constant dense<0.000000e+00> : vector<8x8xf32>
    %9 = tpu.matmul %4, %6, %cst {dimension_numbers = #tpu.dot_dimension_numbers<[1], [1], [0], [0], [0, 0, 1, 0], [], []>} : vector<8x64xf32>, vector<8x64xf32>, vector<8x8xf32> -> vector<8x8xf32>
    %c0_9 = arith.constant 0 : index
    %c0_10 = arith.constant 0 : index
    %10 = vector.load %arg7[%c0_9, %c0_10] : memref<8x128xf32, #tpu.memory_space<vmem>>, vector<8x128xf32>
    %c0_11 = arith.constant 0 : index
    %c0_12 = arith.constant 0 : index
    %11 = vector.load %arg8[%c0_11, %c0_12] : memref<8x128xf32, #tpu.memory_space<vmem>>, vector<8x128xf32>
    %cst_13 = arith.constant dense<0xFF800000> : vector<8xf32>
    %12 = vector.multi_reduction <maximumf>, %9, %cst_13 [1] : vector<8x8xf32> to vector<8xf32>
    %13 = vector.shape_cast %12 : vector<8xf32> to vector<8x1xf32>
    %14 = vector.broadcast %13 : vector<8x1xf32> to vector<8x128xf32>
    %15 = arith.maximumf %10, %14 : vector<8x128xf32>
    %16 = arith.subf %10, %15 : vector<8x128xf32>
    %17 = math.exp %16 : vector<8x128xf32>
    %18 = vector.extract_strided_slice %15 {offsets = [0, 0], sizes = [8, 8], strides = [1, 1]} : vector<8x128xf32> to vector<8x8xf32>
    %19 = arith.subf %9, %18 : vector<8x8xf32>
    %20 = math.exp %19 : vector<8x8xf32>
    %cst_14 = arith.constant dense<0.000000e+00> : vector<8xf32>
    %21 = vector.multi_reduction <add>, %20, %cst_14 [1] : vector<8x8xf32> to vector<8xf32>
    %22 = vector.shape_cast %21 : vector<8xf32> to vector<8x1xf32>
    %23 = arith.mulf %17, %11 : vector<8x128xf32>
    %24 = vector.broadcast %22 : vector<8x1xf32> to vector<8x128xf32>
    %25 = arith.addf %23, %24 : vector<8x128xf32>
    %c0_15 = arith.constant 0 : index
    %c0_16 = arith.constant 0 : index
    %26 = vector.load %arg8[%c0_15, %c0_16] : memref<8x128xf32, #tpu.memory_space<vmem>>, vector<8x128xf32>
    tpu.vector_store %arg8[%c0_15, %c0_16], %25 {strides = array<i32>} : memref<8x128xf32, #tpu.memory_space<vmem>>, vector<8x128xf32>,
    %c0_17 = arith.constant 0 : index
    %c0_18 = arith.constant 0 : index
    %27 = vector.load %arg7[%c0_17, %c0_18] : memref<8x128xf32, #tpu.memory_space<vmem>>, vector<8x128xf32>
    tpu.vector_store %arg7[%c0_17, %c0_18], %15 {strides = array<i32>} : memref<8x128xf32, #tpu.memory_space<vmem>>, vector<8x128xf32>,
    %c0_19 = arith.constant 0 : index
    %c0_20 = arith.constant 0 : index
    %28 = vector.load %arg9[%c0_19, %c0_20] : memref<8x32xf32, #tpu.memory_space<vmem>>, vector<8x32xf32>
    %29 = vector.extract_strided_slice %17 {offsets = [0, 0], sizes = [8, 32], strides = [1, 1]} : vector<8x128xf32> to vector<8x32xf32>
    %30 = arith.mulf %28, %29 : vector<8x32xf32>
    %cst_21 = arith.constant dense<0.000000e+00> : vector<8x32xf32>
    %31 = tpu.matmul %20, %8, %cst_21 {dimension_numbers = #tpu.dot_dimension_numbers<[1], [0], [0], [1], [0, 0, 1, 1], [], []>} : vector<8x8xf32>, vector<8x32xf32>, vector<8x32xf32> -> vector<8x32xf32>
    %32 = arith.addf %30, %31 : vector<8x32xf32>
    %c0_22 = arith.constant 0 : index
    %c0_23 = arith.constant 0 : index
    %33 = vector.load %arg9[%c0_22, %c0_23] : memref<8x32xf32, #tpu.memory_space<vmem>>, vector<8x32xf32>
    tpu.vector_store %arg9[%c0_22, %c0_23], %32 {strides = array<i32>} : memref<8x32xf32, #tpu.memory_space<vmem>>, vector<8x32xf32>,
    %c0_i32_24 = arith.constant 0 : i32
    %34 = arith.cmpi eq, %arg2, %c0_i32_24 : i32
    %35 = arith.extui %34 : i1 to i32
    %c0_i32_25 = arith.constant 0 : i32
    %36 = arith.cmpi ne, %35, %c0_i32_25 : i32
    scf.if %36 {
      %c0_26 = arith.constant 0 : index
      %c0_27 = arith.constant 0 : index
      %37 = vector.load %arg8[%c0_26, %c0_27] : memref<8x128xf32, #tpu.memory_space<vmem>>, vector<8x128xf32>
      %38 = tpu.reciprocal %37 : vector<8x128xf32> -> vector<8x128xf32>
      %c0_28 = arith.constant 0 : index
      %c0_29 = arith.constant 0 : index
      %39 = vector.load %arg9[%c0_28, %c0_29] : memref<8x32xf32, #tpu.memory_space<vmem>>, vector<8x32xf32>
      %40 = vector.extract_strided_slice %38 {offsets = [0, 0], sizes = [8, 32], strides = [1, 1]} : vector<8x128xf32> to vector<8x32xf32>
      %41 = arith.mulf %39, %40 : vector<8x32xf32>
      %c0_30 = arith.constant 0 : index
      %c0_31 = arith.constant 0 : index
      %c0_32 = arith.constant 0 : index
      %42 = vector.load %arg6[%c0_30, %c0_31, %c0_32] : memref<1x8x32xf32, #tpu.memory_space<vmem>>, vector<1x8x32xf32>
      %43 = vector.shape_cast %42 : vector<1x8x32xf32> to vector<8x32xf32>
      %44 = vector.shape_cast %41 : vector<8x32xf32> to vector<1x8x32xf32>
      tpu.vector_store %arg6[%c0_30, %c0_31, %c0_32], %44 {strides = array<i32>} : memref<1x8x32xf32, #tpu.memory_space<vmem>>, vector<1x8x32xf32>,
    } else {
    }
    return
  }
  func.func @transform_0(%arg0: i32, %arg1: i32, %arg2: i32) -> (i32, i32, i32) {
    %c0_i32 = arith.constant 0 : i32
    %c0_i32_0 = arith.constant 0 : i32
    return %arg0, %arg1, %c0_i32 : i32, i32, i32
  }
  func.func @transform_1(%arg0: i32, %arg1: i32, %arg2: i32) -> (i32, i32, i32) {
    %c0_i32 = arith.constant 0 : i32
    %c0_i32_0 = arith.constant 0 : i32
    return %arg0, %arg2, %c0_i32 : i32, i32, i32
  }
  func.func @transform_2(%arg0: i32, %arg1: i32, %arg2: i32) -> (i32, i32, i32) {
    %c0_i32 = arith.constant 0 : i32
    %c0_i32_0 = arith.constant 0 : i32
    return %arg0, %arg2, %c0_i32 : i32, i32, i32
  }
  func.func @transform_3(%arg0: i32, %arg1: i32, %arg2: i32) -> (i32, i32, i32) {
    %c0_i32 = arith.constant 0 : i32
    %c0_i32_0 = arith.constant 0 : i32
    return %arg0, %arg1, %c0_i32 : i32, i32, i32
  }
}

</mosaic_0001>

<llo_original>
// kernel: attention_forward.3
$region0: #{attention_forward.3}
  #allocation0 [shape = 'u32[]', space=smem, size = 0x4, offset = 0x4, fixed_abs, tag = 'smem constant byte address 0x4 - core index']
  #allocation1 [shape = 'u32[144,128]{1,0:T(1,128)}', space=vmem, size = 0x12000, scoped, tag = 'internal scratch']
  #allocation2 [shape = 'f32[8,128]{1,0:T(8,128)}', space=vmem, size = 0x1000, scoped, tag = 'scratch operand']
  #allocation3 [shape = 'f32[8,128]{1,0:T(8,128)}', space=vmem, size = 0x1000, scoped, tag = 'scratch operand']
  #allocation4 [shape = 'f32[8,32]{1,0:T(8,128)}', space=vmem, size = 0x1000, scoped, tag = 'scratch operand']
  %s0 = inlined_call_operand.vmem [shape: f32[2,8,64], index: 0, kind: input, shape index: {}]
  %s1 = inlined_call_operand.vmem [shape: f32[2,8,64], index: 1, kind: input, shape index: {}]
  %s2 = inlined_call_operand.vmem [shape: f32[2,8,32], index: 2, kind: input, shape index: {}]
  %s3 = inlined_call_operand.hbm [shape: f32[2,8,32], index: 3, kind: output, shape index: {}]
  %s4 = sld [smem:[#allocation0]]
  $region53: #{attention_forward.3} parent=0
    _
  %s6 = ssub.s32 1, %s4
  %s7 = scalar_select 0, %s6, %s4
  $region1: #{attention_forward.3} parent=0
    #allocation5 [shape = 'u8[8192]{0}', space=vmem, size = 0x2000, scoped, tag = 'output window, operand 0']
    #allocation6 [shape = 's32[2]{0}', space=sflag, size = 0x8, scoped, tag = 'scoped memory for attention_forward.3']
    %8 = vsyncpa [#allocation6], 0
    %s9 = scalar_lea.sflag [#allocation6], 1
    %10 = vsyncpa %s9, 0
    loop: start=0, step=1, limit=4
    $region2: #{attention_forward.3} parent=1 // loop_pre_header
      _
    $region3: #{attention_forward.3} parent=1 // loop_header
      %s12 = sphi 0, %s16
      %p13 = scmp.ge.s32.totalorder %s12, 4
      %s19 = sphi 0, %s38
      %s20 = sphi 0, %s34
      %s21 = sphi 0, %s30
      %s22 = sphi 0, %s19
      %s23 = sphi 0, %s20
      %s24 = sphi 0, %s21
      %s25 = sphi 0, %s22
      %s26 = sphi 0, %s23
      %s27 = sphi 0, %s24
      %s43 = sphi 0, %s45
      %s46 = sphi 0, %s43
      %s47 = sphi 0, %s46
      %s63 = sphi 0, %s47
      %s71 = sphi 0, %s73
      %s74 = sphi 0, %s71
      %s75 = sphi 0, %s74
      %s91 = sphi 0, %s75
      %s99 = sphi 0, %s101
      %s102 = sphi 0, %s99
      %s103 = sphi 0, %s102
      %s119 = sphi 0, %s103
      %s127 = sphi 0, %s129
      %s130 = sphi 0, %s127
      %s131 = sphi 0, %s130
      %s147 = sphi 0, %s131
    $region4: #{attention_forward.3} parent=1 // loop_header_branch
      %15 = sbr.rel (%p13) target = $region8
    $region5: #{attention_forward.3} parent=1 // loop_body
      %s17 = ssub.s32 %s12, 1
      %s18 = ssub.s32 %s12, 2
      %s28 = sadd.s32 1, %s21
      %p29 = scmp.ge.s32.totalorder %s28, 1
      %s30 = scalar_select %p29, 0, %s28
      %s31 = sadd.s32 1, %s20
      %s32 = scalar_select %p29, %s31, %s20
      %p33 = scmp.ge.s32.totalorder %s32, 1
      %s34 = scalar_select %p33, 0, %s32
      %s35 = sadd.s32 1, %s19
      %s36 = scalar_select %p33, %s35, %s19
      %p37 = scmp.ge.s32.totalorder %s36, 2
      %s38 = scalar_select %p37, 0, %s36
      %s39 = ssub.s32 %s19, %s38
      %s40 = ssub.s32 %s20, %s34
      %s41 = sor.u32 %s39, %s40
      %p42 = scmp.eq.s32.totalorder %s41, 0
      %s44 = sadd.s32 %s43, 1
      %s45 = scalar_select %p42, %s43, %s44
      %p48 = pneg %p42
      %p49 = scmp.eq.s32.totalorder %s12, 1
      %p50 = por %p48, %p49
      %p51 = scmp.ne.s32.totalorder %s43, %s46
      %p52 = scmp.eq.s32.totalorder %s12, 0
      %p53 = por %p51, %p52
      %p54 = scmp.ne.s32.totalorder %s43, %s46
      %p55 = scmp.eq.s32.totalorder %s17, 1
      %p56 = por %p54, %p55
      %p57 = scmp.ne.s32.totalorder %s46, %s47
      %p58 = scmp.eq.s32.totalorder %s17, 0
      %p59 = por %p57, %p58
      %p60 = scmp.ne.s32.totalorder %s46, %s47
      %p61 = scmp.eq.s32.totalorder %s18, 1
      %p62 = por %p60, %p61
      %p64 = scmp.ne.s32.totalorder %s47, %s63
      %p65 = scmp.eq.s32.totalorder %s18, 0
      %p66 = por %p64, %p65
      %s67 = ssub.s32 %s19, %s38
      %s68 = ssub.s32 %s21, %s30
      %s69 = sor.u32 %s67, %s68
      %p70 = scmp.eq.s32.totalorder %s69, 0
      %s72 = sadd.s32 %s71, 1
      %s73 = scalar_select %p70, %s71, %s72
      %p76 = pneg %p70
      %p77 = scmp.eq.s32.totalorder %s12, 1
      %p78 = por %p76, %p77
      %p79 = scmp.ne.s32.totalorder %s71, %s74
      %p80 = scmp.eq.s32.totalorder %s12, 0
      %p81 = por %p79, %p80
      %p82 = scmp.ne.s32.totalorder %s71, %s74
      %p83 = scmp.eq.s32.totalorder %s17, 1
      %p84 = por %p82, %p83
      %p85 = scmp.ne.s32.totalorder %s74, %s75
      %p86 = scmp.eq.s32.totalorder %s17, 0
      %p87 = por %p85, %p86
      %p88 = scmp.ne.s32.totalorder %s74, %s75
      %p89 = scmp.eq.s32.totalorder %s18, 1
      %p90 = por %p88, %p89
      %p92 = scmp.ne.s32.totalorder %s75, %s91
      %p93 = scmp.eq.s32.totalorder %s18, 0
      %p94 = por %p92, %p93
      %s95 = ssub.s32 %s19, %s38
      %s96 = ssub.s32 %s21, %s30
      %s97 = sor.u32 %s95, %s96
      %p98 = scmp.eq.s32.totalorder %s97, 0
      %s100 = sadd.s32 %s99, 1
      %s101 = scalar_select %p98, %s99, %s100
      %p104 = pneg %p98
      %p105 = scmp.eq.s32.totalorder %s12, 1
      %p106 = por %p104, %p105
      %p107 = scmp.ne.s32.totalorder %s99, %s102
      %p108 = scmp.eq.s32.totalorder %s12, 0
      %p109 = por %p107, %p108
      %p110 = scmp.ne.s32.totalorder %s99, %s102
      %p111 = scmp.eq.s32.totalorder %s17, 1
      %p112 = por %p110, %p111
      %p113 = scmp.ne.s32.totalorder %s102, %s103
      %p114 = scmp.eq.s32.totalorder %s17, 0
      %p115 = por %p113, %p114
      %p116 = scmp.ne.s32.totalorder %s102, %s103
      %p117 = scmp.eq.s32.totalorder %s18, 1
      %p118 = por %p116, %p117
      %p120 = scmp.ne.s32.totalorder %s103, %s119
      %p121 = scmp.eq.s32.totalorder %s18, 0
      %p122 = por %p120, %p121
      %s123 = ssub.s32 %s19, %s38
      %s124 = ssub.s32 %s20, %s34
      %s125 = sor.u32 %s123, %s124
      %p126 = scmp.eq.s32.totalorder %s125, 0
      %s128 = sadd.s32 %s127, 1
      %s129 = scalar_select %p126, %s127, %s128
      %p132 = pneg %p126
      %p133 = scmp.eq.s32.totalorder %s12, 1
      %p134 = por %p132, %p133
      %p135 = scmp.ne.s32.totalorder %s127, %s130
      %p136 = scmp.eq.s32.totalorder %s12, 0
      %p137 = por %p135, %p136
      %p138 = scmp.ne.s32.totalorder %s127, %s130
      %p139 = scmp.eq.s32.totalorder %s17, 1
      %p140 = por %p138, %p139
      %p141 = scmp.ne.s32.totalorder %s130, %s131
      %p142 = scmp.eq.s32.totalorder %s17, 0
      %p143 = por %p141, %p142
      %p144 = scmp.ne.s32.totalorder %s130, %s131
      %p145 = scmp.eq.s32.totalorder %s18, 1
      %p146 = por %p144, %p145
      %p148 = scmp.ne.s32.totalorder %s131, %s147
      %p149 = scmp.eq.s32.totalorder %s18, 0
      %p150 = por %p148, %p149
      %p151 = scmp.le.s32.totalorder 1, %s12
      %p152 = scmp.lt.s32.totalorder %s12, 3
      %p153 = pnand %p151, %p152
      %p154 = pneg %p153
      // Predicated region
      $region9: #{attention_forward.3} parent=5 // pred_check
        _
      $region10: #{attention_forward.3} parent=5 // pred_check_branch
        %156 = sbr.rel (%p153) target = $region12
      $region11: #{attention_forward.3} parent=5 // pred_region
        %s157 = ssub.s32 %s12, 1
      $region12: #{attention_forward.3} parent=5 // pred_fallthru
        _
      %p158 = scmp.lt.s32.totalorder %s12, 2
      // Predicated region
      $region13: #{attention_forward.3} parent=5 // pred_check
        %p159 = pneg %p158
      $region14: #{attention_forward.3} parent=5 // pred_check_branch
        %161 = sbr.rel (%p159) target = $region16
      $region15: #{attention_forward.3} parent=5 // pred_region
        // Predicated region
        $region17: #{attention_forward.3} parent=15 // pred_check
          %p162 = pneg %p53
        $region18: #{attention_forward.3} parent=15 // pred_check_branch
          %164 = sbr.rel (%p162) target = $region20
        $region19: #{attention_forward.3} parent=15 // pred_region
          %p165 = scmp.lt.s32.totalorder %s19, 1
          %s166 = scalar_select %p165, %s19, 1
          %p167 = scmp.lt.s32.totalorder %s20, 0
          %s168 = scalar_select %p167, %s20, 0
          %s169 = sadd.s32 %s168, %s166
          %s170 = smul.addr %s169, 8
          %s171 = scalar_lea.vmem %s0, %s170
        $region20: #{attention_forward.3} parent=15 // pred_fallthru
          _
        // Predicated region
        $region21: #{attention_forward.3} parent=15 // pred_check
          %p172 = pneg %p81
        $region22: #{attention_forward.3} parent=15 // pred_check_branch
          %174 = sbr.rel (%p172) target = $region24
        $region23: #{attention_forward.3} parent=15 // pred_region
          %p175 = scmp.lt.s32.totalorder %s19, 1
          %s176 = scalar_select %p175, %s19, 1
          %p177 = scmp.lt.s32.totalorder %s21, 0
          %s178 = scalar_select %p177, %s21, 0
          %s179 = sadd.s32 %s178, %s176
          %s180 = smul.addr %s179, 8
          %s181 = scalar_lea.vmem %s1, %s180
        $region24: #{attention_forward.3} parent=15 // pred_fallthru
          _
        // Predicated region
        $region25: #{attention_forward.3} parent=15 // pred_check
          %p182 = pneg %p109
        $region26: #{attention_forward.3} parent=15 // pred_check_branch
          %184 = sbr.rel (%p182) target = $region28
        $region27: #{attention_forward.3} parent=15 // pred_region
          %p185 = scmp.lt.s32.totalorder %s19, 1
          %s186 = scalar_select %p185, %s19, 1
          %p187 = scmp.lt.s32.totalorder %s21, 0
          %s188 = scalar_select %p187, %s21, 0
          %s189 = sadd.s32 %s188, %s186
          %s190 = smul.addr %s189, 8
          %s191 = scalar_lea.vmem %s2, %s190
        $region28: #{attention_forward.3} parent=15 // pred_fallthru
          _
      $region16: #{attention_forward.3} parent=5 // pred_fallthru
        _
      %p192 = scmp.le.s32.totalorder 1, %s12
      %p193 = scmp.lt.s32.totalorder %s12, 3
      %p194 = pnand %p192, %p193
      %p195 = pneg %p194
      // Predicated region
      $region29: #{attention_forward.3} parent=5 // pred_check
        _
      $region30: #{attention_forward.3} parent=5 // pred_check_branch
        %197 = sbr.rel (%p194) target = $region32
      $region31: #{attention_forward.3} parent=5 // pred_region
        %s198 = ssub.s32 %s12, 1
        %p199 = scmp.lt.s32.totalorder %s22, 1
        %s200 = scalar_select %p199, %s22, 1
        %p201 = scmp.lt.s32.totalorder %s23, 0
        %s202 = scalar_select %p201, %s23, 0
        %s203 = sadd.s32 %s202, %s200
        %s204 = smul.addr %s203, 8
        %s205 = scalar_lea.vmem %s0, %s204
        %p206 = pneg %p59
        %p207 = pneg %p56
        %p208 = scmp.lt.s32.totalorder %s22, 1
        %s209 = scalar_select %p208, %s22, 1
        %p210 = scmp.lt.s32.totalorder %s24, 0
        %s211 = scalar_select %p210, %s24, 0
        %s212 = sadd.s32 %s211, %s209
        %s213 = smul.addr %s212, 8
        %s214 = scalar_lea.vmem %s1, %s213
        %p215 = pneg %p87
        %p216 = pneg %p84
        %p217 = scmp.lt.s32.totalorder %s22, 1
        %s218 = scalar_select %p217, %s22, 1
        %p219 = scmp.lt.s32.totalorder %s24, 0
        %s220 = scalar_select %p219, %s24, 0
        %s221 = sadd.s32 %s220, %s218
        %s222 = smul.addr %s221, 8
        %s223 = scalar_lea.vmem %s2, %s222
        %p224 = pneg %p115
        %p225 = pneg %p112
        %p226 = pneg %p143
        %p227 = pneg %p140
        %s228 = sand.u32 %s130, 1
        %s229 = scalar_lea.sflag [#allocation6], %s228
        %s230 = sand.u32 %s130, 1
        %s231 = smul.addr %s230, 8
        %s232 = scalar_lea.vmem [#allocation5], %s231
        %p233 = scmp.lt.s32.totalorder %s22, 1
        %s234 = scalar_select %p233, %s22, 1
        %p235 = scmp.lt.s32.totalorder %s23, 0
        %s236 = scalar_select %p235, %s23, 0
        %s237 = sadd.s32 %s236, %s234
        %s238 = smul.addr %s237, 8
        %s239 = scalar_lea.vmem %s0, %s238
        %p240 = scmp.lt.s32.totalorder %s22, 1
        %s241 = scalar_select %p240, %s22, 1
        %p242 = scmp.lt.s32.totalorder %s24, 0
        %s243 = scalar_select %p242, %s24, 0
        %s244 = sadd.s32 %s243, %s241
        %s245 = smul.addr %s244, 8
        %s246 = scalar_lea.vmem %s1, %s245
        %p247 = scmp.lt.s32.totalorder %s22, 1
        %s248 = scalar_select %p247, %s22, 1
        %p249 = scmp.lt.s32.totalorder %s24, 0
        %s250 = scalar_select %p249, %s24, 0
        %s251 = sadd.s32 %s250, %s248
        %s252 = smul.addr %s251, 8
        %s253 = scalar_lea.vmem %s2, %s252
        %p254 = scmp.eq.s32.totalorder %s24, 0
        // Predicated region
        $region33: #{attention_forward.3} parent=31 // pred_check
          %p255 = pneg %p254
        $region34: #{attention_forward.3} parent=31 // pred_check_branch
          %257 = sbr.rel (%p255) target = $region36
        $region35: #{attention_forward.3} parent=31 // pred_region
          %258 = vst [vmem:[#allocation2] sm:$0xff] -inf
          %259 = vst [vmem:[#allocation3] sm:$0xff] 0.0
          %vm260 = vcmask 261120
          %261 = vst.msk [vmem:[#allocation4] sm:$0xff] %vm260, 0.0
        $region36: #{attention_forward.3} parent=31 // pred_fallthru
          _
        %v262 = vld [vmem:[%s239] sm:$0xff]
        %v263 = vld [vmem:[%s246] sm:$0xff]
        %v264 = vld [vmem:[%s253] sm:$0xff]
        %vm265 = vcmask 523264
        %v267 = vsel %vm265, %v262, 0
        %v270 = vsel %vm265, %v263, 0
        %272 = vmatprep.subr.mxu0 0.0
        %273 = vmatpush1.xpose.msra.mxu0 0.0
        %274 = vmatprep.subr.mxu0 0.0
        %275 = vmatpush1.xpose.msra.mxu0 0.0
        %276 = vmatprep.subr.mxu0 0.0
        %277 = vmatpush1.xpose.msra.mxu0 0.0
        %278 = vmatprep.subr.mxu0 0.0
        %279 = vmatpush1.xpose.msra.mxu0 0.0
        %280 = vmatprep.subr.mxu0 0.0
        %281 = vmatpush1.xpose.msra.mxu0 0.0
        %282 = vmatprep.subr.mxu0 0.0
        %283 = vmatpush1.xpose.msra.mxu0 0.0
        %284 = vmatprep.subr.mxu0 0.0
        %285 = vmatpush1.xpose.msra.mxu0 0.0
        %286 = vmatprep.subr.mxu0 0.0
        %287 = vmatpush1.xpose.msra.mxu0 0.0
        %288 = vmatprep.subr.mxu0 0.0
        %289 = vmatpush1.xpose.msra.mxu0 0.0
        %290 = vmatprep.subr.mxu0 0.0
        %291 = vmatpush1.xpose.msra.mxu0 0.0
        %292 = vmatprep.subr.mxu0 0.0
        %293 = vmatpush1.xpose.msra.mxu0 0.0
        %294 = vmatprep.subr.mxu0 0.0
        %295 = vmatpush1.xpose.msra.mxu0 0.0
        %296 = vmatprep.subr.mxu0 0.0
        %297 = vmatpush1.xpose.msra.mxu0 0.0
        %298 = vmatprep.subr.mxu0 0.0
        %299 = vmatpush1.xpose.msra.mxu0 0.0
        %300 = vmatprep.subr.mxu0 0.0
        %301 = vmatpush1.xpose.msra.mxu0 0.0
        %302 = vmatprep.subr.mxu0 0.0
        %303 = vmatpush1.xpose.msra.mxu0 %v270
        %304 = vmatprep.subr.mxu0 0.0
        %305 = vmatpush2.xpose.msra.mxu0 0.0
        %306 = vmatprep.subr.mxu0 0.0
        %307 = vmatpush2.xpose.msra.mxu0 0.0
        %308 = vmatprep.subr.mxu0 0.0
        %309 = vmatpush2.xpose.msra.mxu0 0.0
        %310 = vmatprep.subr.mxu0 0.0
        %311 = vmatpush2.xpose.msra.mxu0 0.0
        %312 = vmatprep.subr.mxu0 0.0
        %313 = vmatpush2.xpose.msra.mxu0 0.0
        %314 = vmatprep.subr.mxu0 0.0
        %315 = vmatpush2.xpose.msra.mxu0 0.0
        %316 = vmatprep.subr.mxu0 0.0
        %317 = vmatpush2.xpose.msra.mxu0 0.0
        %318 = vmatprep.subr.mxu0 0.0
        %319 = vmatpush2.xpose.msra.mxu0 0.0
        %320 = vmatprep.subr.mxu0 0.0
        %321 = vmatpush2.xpose.msra.mxu0 0.0
        %322 = vmatprep.subr.mxu0 0.0
        %323 = vmatpush2.xpose.msra.mxu0 0.0
        %324 = vmatprep.subr.mxu0 0.0
        %325 = vmatpush2.xpose.msra.mxu0 0.0
        %326 = vmatprep.subr.mxu0 0.0
        %327 = vmatpush2.xpose.msra.mxu0 0.0
        %328 = vmatprep.subr.mxu0 0.0
        %329 = vmatpush2.xpose.msra.mxu0 0.0
        %330 = vmatprep.subr.mxu0 0.0
        %331 = vmatpush2.xpose.msra.mxu0 0.0
        %332 = vmatprep.subr.mxu0 0.0
        %333 = vmatpush2.xpose.msra.mxu0 0.0
        %334 = vmatprep.subr.mxu0 0.0
        %335 = vmatpush2.xpose.msra.mxu0 0.0
        %336 = vmatprep.mubr.f32.mxu0 0.0
        %337 = vmatmul.mubr.f32.gmra.mxu0 %v267
        %v338 = vpop.f32.mrf.mxu0
        %v339 = vadd.f32 0.0, %v338
        %v340 = vpop.f32.mrf.mxu0
        %341 = vdwg.mxu0
        %v342 = vld [vmem:[#allocation2] sm:$0xff]
        %v343 = vld [vmem:[#allocation3] sm:$0xff]
        %vm344 = vcmask 64512
        %v345 = vsel %vm344, %v339, -inf
        %346 = vmax.xlane.f32.xlu0 %v345
        %v347 = vpop.xlane.xlu0 %346
        %v348 = vmax.f32 %v342, %v347
        %v349 = vsub.f32 %v342, %v348
        %v350 = vmul.f32 %v349, 1.442695
        %v351 = vpow.pop %v350
        %v352 = vsub.f32 %v339, %v348
        %v353 = vmul.f32 %v352, 1.442695
        %v354 = vpow.pop %v353
        %v355 = vsel %vm344, %v354, 0.0
        %356 = vadd.xlane.f32.xlu0 %v355
        %v357 = vpop.xlane.xlu0 %356
        %v358 = vmul.f32 %v351, %v343
        %v359 = vadd.f32 %v358, %v357
        %360 = vst [vmem:[#allocation3] sm:$0xff] %v359
        %361 = vst [vmem:[#allocation2] sm:$0xff] %v348
        %v362 = vld [vmem:[#allocation4] sm:$0xff]
        %v363 = vmul.f32 %v362, %v351
        %v365 = vsel %vm344, %v354, 0
        %367 = vmatprep.subr.mxu0 0.0
        %368 = vmatpush1.msra.mxu0 0.0
        %369 = vmatprep.subr.mxu0 0.0
        %370 = vmatpush1.msra.mxu0 0.0
        %371 = vmatprep.subr.mxu0 0.0
        %372 = vmatpush1.msra.mxu0 0.0
        %373 = vmatprep.subr.mxu0 0.0
        %374 = vmatpush1.msra.mxu0 0.0
        %375 = vmatprep.subr.mxu0 0.0
        %376 = vmatpush1.msra.mxu0 0.0
        %377 = vmatprep.subr.mxu0 0.0
        %378 = vmatpush1.msra.mxu0 0.0
        %379 = vmatprep.subr.mxu0 0.0
        %380 = vmatpush1.msra.mxu0 0.0
        %381 = vmatprep.subr.mxu0 0.0
        %382 = vmatpush1.msra.mxu0 0.0
        %383 = vmatprep.subr.mxu0 0.0
        %384 = vmatpush1.msra.mxu0 0.0
        %385 = vmatprep.subr.mxu0 0.0
        %386 = vmatpush1.msra.mxu0 0.0
        %387 = vmatprep.subr.mxu0 0.0
        %388 = vmatpush1.msra.mxu0 0.0
        %389 = vmatprep.subr.mxu0 0.0
        %390 = vmatpush1.msra.mxu0 0.0
        %391 = vmatprep.subr.mxu0 0.0
        %392 = vmatpush1.msra.mxu0 0.0
        %393 = vmatprep.subr.mxu0 0.0
        %394 = vmatpush1.msra.mxu0 0.0
        %395 = vmatprep.subr.mxu0 0.0
        %396 = vmatpush1.msra.mxu0 0.0
        %397 = vmatprep.subr.mxu0 0.0
        %398 = vmatpush1.msra.mxu0 %v264
        %399 = vmatprep.subr.mxu0 0.0
        %400 = vmatpush2.msra.mxu0 0.0
        %401 = vmatprep.subr.mxu0 0.0
        %402 = vmatpush2.msra.mxu0 0.0
        %403 = vmatprep.subr.mxu0 0.0
        %404 = vmatpush2.msra.mxu0 0.0
        %405 = vmatprep.subr.mxu0 0.0
        %406 = vmatpush2.msra.mxu0 0.0
        %407 = vmatprep.subr.mxu0 0.0
        %408 = vmatpush2.msra.mxu0 0.0
        %409 = vmatprep.subr.mxu0 0.0
        %410 = vmatpush2.msra.mxu0 0.0
        %411 = vmatprep.subr.mxu0 0.0
        %412 = vmatpush2.msra.mxu0 0.0
        %413 = vmatprep.subr.mxu0 0.0
        %414 = vmatpush2.msra.mxu0 0.0
        %415 = vmatprep.subr.mxu0 0.0
        %416 = vmatpush2.msra.mxu0 0.0
        %417 = vmatprep.subr.mxu0 0.0
        %418 = vmatpush2.msra.mxu0 0.0
        %419 = vmatprep.subr.mxu0 0.0
        %420 = vmatpush2.msra.mxu0 0.0
        %421 = vmatprep.subr.mxu0 0.0
        %422 = vmatpush2.msra.mxu0 0.0
        %423 = vmatprep.subr.mxu0 0.0
        %424 = vmatpush2.msra.mxu0 0.0
        %425 = vmatprep.subr.mxu0 0.0
        %426 = vmatpush2.msra.mxu0 0.0
        %427 = vmatprep.subr.mxu0 0.0
        %428 = vmatpush2.msra.mxu0 0.0
        %429 = vmatprep.subr.mxu0 0.0
        %430 = vmatpush2.msra.mxu0 0.0
        %431 = vmatprep.mubr.f32.mxu0 0.0
        %432 = vmatmul.mubr.f32.gmra.mxu0 %v365
        %v433 = vpop.f32.mrf.mxu0
        %v434 = vadd.f32 0.0, %v433
        %v435 = vpop.f32.mrf.mxu0
        %436 = vdwg.mxu0
        %v437 = vadd.f32 %v363, %v434
        %vm438 = vcmask 261120
        %439 = vst.msk [vmem:[#allocation4] sm:$0xff] %vm438, %v437
        // Predicated region
        $region37: #{attention_forward.3} parent=31 // pred_check
          %p440 = pneg %p254
        $region38: #{attention_forward.3} parent=31 // pred_check_branch
          %442 = sbr.rel (%p440) target = $region40
        $region39: #{attention_forward.3} parent=31 // pred_region
          %v443 = vld [vmem:[#allocation3] sm:$0xff]
          %v444 = vrcp.pop %v443
          %v445 = vld [vmem:[#allocation4] sm:$0xff]
          %v446 = vmul.f32 %v445, %v444
          %447 = vst.msk [vmem:[%s232] sm:$0xff] %vm438, %v446
        $region40: #{attention_forward.3} parent=31 // pred_fallthru
          _
        %s448 = sand.u32 %s130, 1
        %s449 = scalar_lea.sflag [#allocation6], %s448
        %s450 = sand.u32 %s130, 1
        %s451 = smul.addr %s450, 8
        %s452 = scalar_lea.vmem [#allocation5], %s451
        // Predicated region
        $region41: #{attention_forward.3} parent=31 // pred_check
          %p453 = pneg %p140
        $region42: #{attention_forward.3} parent=31 // pred_check_branch
          %455 = sbr.rel (%p453) target = $region44
        $region43: #{attention_forward.3} parent=31 // pred_region
          %s457 = ssub.s32 128, 128
          %458 = vsyncadd %s449, %s457
          %s459 = sadd.s32 %s23, %s22
          %s460 = smul.addr %s459, 128
          %s461 = scalar_lea.hbm %s3, %s460
          %s463 = sshll.u32 %s452, 4
          %s464 = int_to_ptr.vmem [resolvable:$true] %s463
          %466 = dma.vmem_to_hbm [thread:$0]  %s464, 128, %s461, %s449
        $region44: #{attention_forward.3} parent=31 // pred_fallthru
          _
      $region32: #{attention_forward.3} parent=5 // pred_fallthru
        _
      %p467 = scmp.le.s32.totalorder 2, %s12
      // Predicated region
      $region45: #{attention_forward.3} parent=5 // pred_check
        %p468 = pneg %p467
      $region46: #{attention_forward.3} parent=5 // pred_check_branch
        %470 = sbr.rel (%p468) target = $region48
      $region47: #{attention_forward.3} parent=5 // pred_region
        %s471 = ssub.s32 %s12, 2
        // Predicated region
        $region49: #{attention_forward.3} parent=47 // pred_check
          %p472 = pneg %p146
        $region50: #{attention_forward.3} parent=47 // pred_check_branch
          %474 = sbr.rel (%p472) target = $region52
        $region51: #{attention_forward.3} parent=47 // pred_region
          %s475 = sand.u32 %s131, 1
          %s476 = scalar_lea.sflag [#allocation6], %s475
          %s477 = sand.u32 %s131, 1
          %s478 = smul.addr %s477, 8
          %s479 = scalar_lea.vmem [#allocation5], %s478
          %480 = dma.done %s476, 128
        $region52: #{attention_forward.3} parent=47 // pred_fallthru
          _
      $region48: #{attention_forward.3} parent=5 // pred_fallthru
        _
    $region6: #{attention_forward.3} parent=1 // loop_footer
      %s16 = sadd.s32 1, %s12
    $region7: #{attention_forward.3} parent=1 // loop_footer_branch
      %11 = sbr.rel target = $region3
    $region8: #{attention_forward.3} parent=1 // loop_exit
      _
    %481 = vsyncpa [#allocation6], 1
    %s482 = scalar_lea.sflag [#allocation6], 1
    %483 = vsyncpa %s482, 1

// kernel: attention_forward.2
$region0: #{attention_forward.2}
  #allocation0 [shape = 'u32[]', space=smem, size = 0x4, offset = 0x4, fixed_abs, tag = 'smem constant byte address 0x4 - core index']
  #allocation1 [shape = 'u32[144,128]{1,0:T(1,128)}', space=vmem, size = 0x12000, scoped, tag = 'internal scratch']
  %s0 = inlined_call_operand.vmem [shape: f32[2,8,32], index: 0, kind: input, shape index: {}]
  %s1 = inlined_call_operand.vmem [shape: f32[32,160], index: 1, kind: input, shape index: {}]
  %s2 = inlined_call_operand.vmem [shape: f32[2,8,64], index: 2, kind: output, shape index: {0}]
  %s3 = inlined_call_operand.vmem [shape: f32[2,8,64], index: 3, kind: output, shape index: {1}]
  %s4 = inlined_call_operand.vmem [shape: f32[2,8,32], index: 4, kind: output, shape index: {2}]
  %5 = xla_tuple %s2, %s3, %s4
  %s6 = sld [smem:[#allocation0]]
  $region57: #{attention_forward.2} parent=0
    _
  %s8 = ssub.s32 1, %s6
  %s9 = scalar_select 0, %s8, %s6
  loop: start=0, step=1, limit=4
  $region2: #{attention_forward.2} parent=0 // loop_pre_header
    _
  $region3: #{attention_forward.2} parent=0 // loop_header
    %s11 = sphi 0, %s15
    %p12 = scmp.ge.s32.totalorder %s11, 4
    %s18 = sphi 0, %s30
    %s19 = sphi 0, %s26
    %s20 = sphi 0, %s18
    %s21 = sphi 0, %s19
    %s22 = sphi 0, %s20
    %s23 = sphi 0, %s21
    %s35 = sphi 0, %s37
    %s38 = sphi 0, %s35
    %s39 = sphi 0, %s38
    %s55 = sphi 0, %s39
    %s59 = sphi 0, %s59
    %s61 = sphi 0, %s59
    %s62 = sphi 0, %s61
    %s76 = sphi 0, %s62
    %s84 = sphi 0, %s86
    %s87 = sphi 0, %s84
    %s88 = sphi 0, %s87
    %s104 = sphi 0, %s88
    %s112 = sphi 0, %s114
    %s115 = sphi 0, %s112
    %s116 = sphi 0, %s115
    %s132 = sphi 0, %s116
    %s140 = sphi 0, %s142
    %s143 = sphi 0, %s140
    %s144 = sphi 0, %s143
    %s160 = sphi 0, %s144
  $region4: #{attention_forward.2} parent=0 // loop_header_branch
    %14 = sbr.rel (%p12) target = $region8
  $region5: #{attention_forward.2} parent=0 // loop_body
    %s16 = ssub.s32 %s11, 1
    %s17 = ssub.s32 %s11, 2
    %s24 = sadd.s32 1, %s19
    %p25 = scmp.ge.s32.totalorder %s24, 1
    %s26 = scalar_select %p25, 0, %s24
    %s27 = sadd.s32 1, %s18
    %s28 = scalar_select %p25, %s27, %s18
    %p29 = scmp.ge.s32.totalorder %s28, 2
    %s30 = scalar_select %p29, 0, %s28
    %s31 = ssub.s32 %s18, %s30
    %s32 = ssub.s32 %s19, %s26
    %s33 = sor.u32 %s31, %s32
    %p34 = scmp.eq.s32.totalorder %s33, 0
    %s36 = sadd.s32 %s35, 1
    %s37 = scalar_select %p34, %s35, %s36
    %p40 = pneg %p34
    %p41 = scmp.eq.s32.totalorder %s11, 1
    %p42 = por %p40, %p41
    %p43 = scmp.ne.s32.totalorder %s35, %s38
    %p44 = scmp.eq.s32.totalorder %s11, 0
    %p45 = por %p43, %p44
    %p46 = scmp.ne.s32.totalorder %s35, %s38
    %p47 = scmp.eq.s32.totalorder %s16, 1
    %p48 = por %p46, %p47
    %p49 = scmp.ne.s32.totalorder %s38, %s39
    %p50 = scmp.eq.s32.totalorder %s16, 0
    %p51 = por %p49, %p50
    %p52 = scmp.ne.s32.totalorder %s38, %s39
    %p53 = scmp.eq.s32.totalorder %s17, 1
    %p54 = por %p52, %p53
    %p56 = scmp.ne.s32.totalorder %s39, %s55
    %p57 = scmp.eq.s32.totalorder %s17, 0
    %p58 = por %p56, %p57
    %s60 = sadd.s32 %s59, 1
    %p63 = scmp.eq.s32.totalorder %s11, 1
    %p64 = scmp.ne.s32.totalorder %s59, %s61
    %p65 = scmp.eq.s32.totalorder %s11, 0
    %p66 = por %p64, %p65
    %p67 = scmp.ne.s32.totalorder %s59, %s61
    %p68 = scmp.eq.s32.totalorder %s16, 1
    %p69 = por %p67, %p68
    %p70 = scmp.ne.s32.totalorder %s61, %s62
    %p71 = scmp.eq.s32.totalorder %s16, 0
    %p72 = por %p70, %p71
    %p73 = scmp.ne.s32.totalorder %s61, %s62
    %p74 = scmp.eq.s32.totalorder %s17, 1
    %p75 = por %p73, %p74
    %p77 = scmp.ne.s32.totalorder %s62, %s76
    %p78 = scmp.eq.s32.totalorder %s17, 0
    %p79 = por %p77, %p78
    %s80 = ssub.s32 %s18, %s30
    %s81 = ssub.s32 %s19, %s26
    %s82 = sor.u32 %s80, %s81
    %p83 = scmp.eq.s32.totalorder %s82, 0
    %s85 = sadd.s32 %s84, 1
    %s86 = scalar_select %p83, %s84, %s85
    %p89 = pneg %p83
    %p90 = scmp.eq.s32.totalorder %s11, 1
    %p91 = por %p89, %p90
    %p92 = scmp.ne.s32.totalorder %s84, %s87
    %p93 = scmp.eq.s32.totalorder %s11, 0
    %p94 = por %p92, %p93
    %p95 = scmp.ne.s32.totalorder %s84, %s87
    %p96 = scmp.eq.s32.totalorder %s16, 1
    %p97 = por %p95, %p96
    %p98 = scmp.ne.s32.totalorder %s87, %s88
    %p99 = scmp.eq.s32.totalorder %s16, 0
    %p100 = por %p98, %p99
    %p101 = scmp.ne.s32.totalorder %s87, %s88
    %p102 = scmp.eq.s32.totalorder %s17, 1
    %p103 = por %p101, %p102
    %p105 = scmp.ne.s32.totalorder %s88, %s104
    %p106 = scmp.eq.s32.totalorder %s17, 0
    %p107 = por %p105, %p106
    %s108 = ssub.s32 %s18, %s30
    %s109 = ssub.s32 %s19, %s26
    %s110 = sor.u32 %s108, %s109
    %p111 = scmp.eq.s32.totalorder %s110, 0
    %s113 = sadd.s32 %s112, 1
    %s114 = scalar_select %p111, %s112, %s113
    %p117 = pneg %p111
    %p118 = scmp.eq.s32.totalorder %s11, 1
    %p119 = por %p117, %p118
    %p120 = scmp.ne.s32.totalorder %s112, %s115
    %p121 = scmp.eq.s32.totalorder %s11, 0
    %p122 = por %p120, %p121
    %p123 = scmp.ne.s32.totalorder %s112, %s115
    %p124 = scmp.eq.s32.totalorder %s16, 1
    %p125 = por %p123, %p124
    %p126 = scmp.ne.s32.totalorder %s115, %s116
    %p127 = scmp.eq.s32.totalorder %s16, 0
    %p128 = por %p126, %p127
    %p129 = scmp.ne.s32.totalorder %s115, %s116
    %p130 = scmp.eq.s32.totalorder %s17, 1
    %p131 = por %p129, %p130
    %p133 = scmp.ne.s32.totalorder %s116, %s132
    %p134 = scmp.eq.s32.totalorder %s17, 0
    %p135 = por %p133, %p134
    %s136 = ssub.s32 %s18, %s30
    %s137 = ssub.s32 %s19, %s26
    %s138 = sor.u32 %s136, %s137
    %p139 = scmp.eq.s32.totalorder %s138, 0
    %s141 = sadd.s32 %s140, 1
    %s142 = scalar_select %p139, %s140, %s141
    %p145 = pneg %p139
    %p146 = scmp.eq.s32.totalorder %s11, 1
    %p147 = por %p145, %p146
    %p148 = scmp.ne.s32.totalorder %s140, %s143
    %p149 = scmp.eq.s32.totalorder %s11, 0
    %p150 = por %p148, %p149
    %p151 = scmp.ne.s32.totalorder %s140, %s143
    %p152 = scmp.eq.s32.totalorder %s16, 1
    %p153 = por %p151, %p152
    %p154 = scmp.ne.s32.totalorder %s143, %s144
    %p155 = scmp.eq.s32.totalorder %s16, 0
    %p156 = por %p154, %p155
    %p157 = scmp.ne.s32.totalorder %s143, %s144
    %p158 = scmp.eq.s32.totalorder %s17, 1
    %p159 = por %p157, %p158
    %p161 = scmp.ne.s32.totalorder %s144, %s160
    %p162 = scmp.eq.s32.totalorder %s17, 0
    %p163 = por %p161, %p162
    %p164 = scmp.le.s32.totalorder 1, %s11
    %p165 = scmp.lt.s32.totalorder %s11, 3
    %p166 = pnand %p164, %p165
    %p167 = pneg %p166
    // Predicated region
    $region9: #{attention_forward.2} parent=5 // pred_check
      _
    $region10: #{attention_forward.2} parent=5 // pred_check_branch
      %169 = sbr.rel (%p166) target = $region12
    $region11: #{attention_forward.2} parent=5 // pred_region
      %s170 = ssub.s32 %s11, 1
      // Predicated region
      $region13: #{attention_forward.2} parent=11 // pred_check
        %p171 = pneg %p72
      $region14: #{attention_forward.2} parent=11 // pred_check_branch
        %173 = sbr.rel (%p171) target = $region16
      $region15: #{attention_forward.2} parent=11 // pred_region
        _
      $region16: #{attention_forward.2} parent=11 // pred_fallthru
        _
    $region12: #{attention_forward.2} parent=5 // pred_fallthru
      _
    %p174 = scmp.lt.s32.totalorder %s11, 2
    // Predicated region
    $region17: #{attention_forward.2} parent=5 // pred_check
      %p175 = pneg %p174
    $region18: #{attention_forward.2} parent=5 // pred_check_branch
      %177 = sbr.rel (%p175) target = $region20
    $region19: #{attention_forward.2} parent=5 // pred_region
      // Predicated region
      $region21: #{attention_forward.2} parent=19 // pred_check
        %p178 = pneg %p45
      $region22: #{attention_forward.2} parent=19 // pred_check_branch
        %180 = sbr.rel (%p178) target = $region24
      $region23: #{attention_forward.2} parent=19 // pred_region
        %p181 = scmp.lt.s32.totalorder %s18, 1
        %s182 = scalar_select %p181, %s18, 1
        %p183 = scmp.lt.s32.totalorder %s19, 0
        %s184 = scalar_select %p183, %s19, 0
        %s185 = sadd.s32 %s184, %s182
        %s186 = smul.addr %s185, 8
        %s187 = scalar_lea.vmem %s0, %s186
      $region24: #{attention_forward.2} parent=19 // pred_fallthru
        _
    $region20: #{attention_forward.2} parent=5 // pred_fallthru
      _
    %p188 = scmp.le.s32.totalorder 1, %s11
    %p189 = scmp.lt.s32.totalorder %s11, 3
    %p190 = pnand %p188, %p189
    %p191 = pneg %p190
    // Predicated region
    $region25: #{attention_forward.2} parent=5 // pred_check
      _
    $region26: #{attention_forward.2} parent=5 // pred_check_branch
      %193 = sbr.rel (%p190) target = $region28
    $region27: #{attention_forward.2} parent=5 // pred_region
      %s194 = ssub.s32 %s11, 1
      %p195 = scmp.lt.s32.totalorder %s20, 1
      %s196 = scalar_select %p195, %s20, 1
      %p197 = scmp.lt.s32.totalorder %s21, 0
      %s198 = scalar_select %p197, %s21, 0
      %s199 = sadd.s32 %s198, %s196
      %s200 = smul.addr %s199, 8
      %s201 = scalar_lea.vmem %s0, %s200
      %p202 = pneg %p51
      %p203 = pneg %p48
      %p204 = pneg %p72
      %p205 = pneg %p69
      %p206 = pneg %p100
      %p207 = pneg %p97
      %p208 = scmp.lt.s32.totalorder %s20, 1
      %s209 = scalar_select %p208, %s20, 1
      %p210 = scmp.lt.s32.totalorder %s21, 0
      %s211 = scalar_select %p210, %s21, 0
      %s212 = sadd.s32 %s211, %s209
      %s213 = smul.addr %s212, 8
      %s214 = scalar_lea.vmem %s2, %s213
      %p215 = pneg %p128
      %p216 = pneg %p125
      %p217 = scmp.lt.s32.totalorder %s20, 1
      %s218 = scalar_select %p217, %s20, 1
      %p219 = scmp.lt.s32.totalorder %s21, 0
      %s220 = scalar_select %p219, %s21, 0
      %s221 = sadd.s32 %s220, %s218
      %s222 = smul.addr %s221, 8
      %s223 = scalar_lea.vmem %s3, %s222
      %p224 = pneg %p156
      %p225 = pneg %p153
      %p226 = scmp.lt.s32.totalorder %s20, 1
      %s227 = scalar_select %p226, %s20, 1
      %p228 = scmp.lt.s32.totalorder %s21, 0
      %s229 = scalar_select %p228, %s21, 0
      %s230 = sadd.s32 %s229, %s227
      %s231 = smul.addr %s230, 8
      %s232 = scalar_lea.vmem %s4, %s231
      %p233 = scmp.lt.s32.totalorder %s20, 1
      %s234 = scalar_select %p233, %s20, 1
      %p235 = scmp.lt.s32.totalorder %s21, 0
      %s236 = scalar_select %p235, %s21, 0
      %s237 = sadd.s32 %s236, %s234
      %s238 = smul.addr %s237, 8
      %s239 = scalar_lea.vmem %s0, %s238
      %p240 = scmp.lt.s32.totalorder %s20, 1
      %s241 = scalar_select %p240, %s20, 1
      %p242 = scmp.lt.s32.totalorder %s21, 0
      %s243 = scalar_select %p242, %s21, 0
      %s244 = sadd.s32 %s243, %s241
      %s245 = smul.addr %s244, 8
      %s246 = scalar_lea.vmem %s2, %s245
      %p247 = scmp.lt.s32.totalorder %s20, 1
      %s248 = scalar_select %p247, %s20, 1
      %p249 = scmp.lt.s32.totalorder %s21, 0
      %s250 = scalar_select %p249, %s21, 0
      %s251 = sadd.s32 %s250, %s248
      %s252 = smul.addr %s251, 8
      %s253 = scalar_lea.vmem %s3, %s252
      %p254 = scmp.lt.s32.totalorder %s20, 1
      %s255 = scalar_select %p254, %s20, 1
      %p256 = scmp.lt.s32.totalorder %s21, 0
      %s257 = scalar_select %p256, %s21, 0
      %s258 = sadd.s32 %s257, %s255
      %s259 = smul.addr %s258, 8
      %s260 = scalar_lea.vmem %s4, %s259
      %v261 = vld [vmem:[%s239] sm:$0xff]
      %v262 = vld [vmem:[%s1] sm:$0xff]
      %v263 = vld [vmem:[%s1 + $0x8] sm:$0xff]
      %v264 = vld [vmem:[%s1 + $0x10] sm:$0xff]
      %v265 = vld [vmem:[%s1 + $0x18] sm:$0xff]
      %v266 = vld [vmem:[%s1 + $0x20] sm:$0xff]
      %v267 = vld [vmem:[%s1 + $0x28] sm:$0xff]
      %v268 = vld [vmem:[%s1 + $0x30] sm:$0xff]
      %v269 = vld [vmem:[%s1 + $0x38] sm:$0xff]
      %vm270 = vcmask 261120
      %v272 = vsel %vm270, %v261, 0
      %274 = vmatprep.subr.mxu0 0.0
      %275 = vmatpush1.msra.mxu0 0.0
      %276 = vmatprep.subr.mxu0 0.0
      %277 = vmatpush1.msra.mxu0 0.0
      %278 = vmatprep.subr.mxu0 0.0
      %279 = vmatpush1.msra.mxu0 0.0
      %280 = vmatprep.subr.mxu0 0.0
      %281 = vmatpush1.msra.mxu0 0.0
      %282 = vmatprep.subr.mxu0 0.0
      %283 = vmatpush1.msra.mxu0 0.0
      %284 = vmatprep.subr.mxu0 0.0
      %285 = vmatpush1.msra.mxu0 0.0
      %286 = vmatprep.subr.mxu0 0.0
      %287 = vmatpush1.msra.mxu0 0.0
      %288 = vmatprep.subr.mxu0 0.0
      %289 = vmatpush1.msra.mxu0 0.0
      %290 = vmatprep.subr.mxu0 0.0
      %291 = vmatpush1.msra.mxu0 0.0
      %292 = vmatprep.subr.mxu0 0.0
      %293 = vmatpush1.msra.mxu0 0.0
      %294 = vmatprep.subr.mxu0 0.0
      %295 = vmatpush1.msra.mxu0 0.0
      %296 = vmatprep.subr.mxu0 0.0
      %297 = vmatpush1.msra.mxu0 0.0
      %298 = vmatprep.subr.mxu0 %v269
      %299 = vmatpush1.msra.mxu0 %v268
      %300 = vmatprep.subr.mxu0 %v267
      %301 = vmatpush1.msra.mxu0 %v266
      %302 = vmatprep.subr.mxu0 %v265
      %303 = vmatpush1.msra.mxu0 %v264
      %304 = vmatprep.subr.mxu0 %v263
      %305 = vmatpush1.msra.mxu0 %v262
      %306 = vmatprep.subr.mxu0 0.0
      %307 = vmatpush2.msra.mxu0 0.0
      %308 = vmatprep.subr.mxu0 0.0
      %309 = vmatpush2.msra.mxu0 0.0
      %310 = vmatprep.subr.mxu0 0.0
      %311 = vmatpush2.msra.mxu0 0.0
      %312 = vmatprep.subr.mxu0 0.0
      %313 = vmatpush2.msra.mxu0 0.0
      %314 = vmatprep.subr.mxu0 0.0
      %315 = vmatpush2.msra.mxu0 0.0
      %316 = vmatprep.subr.mxu0 0.0
      %317 = vmatpush2.msra.mxu0 0.0
      %318 = vmatprep.subr.mxu0 0.0
      %319 = vmatpush2.msra.mxu0 0.0
      %320 = vmatprep.subr.mxu0 0.0
      %321 = vmatpush2.msra.mxu0 0.0
      %322 = vmatprep.subr.mxu0 0.0
      %323 = vmatpush2.msra.mxu0 0.0
      %324 = vmatprep.subr.mxu0 0.0
      %325 = vmatpush2.msra.mxu0 0.0
      %326 = vmatprep.subr.mxu0 0.0
      %327 = vmatpush2.msra.mxu0 0.0
      %328 = vmatprep.subr.mxu0 0.0
      %329 = vmatpush2.msra.mxu0 0.0
      %330 = vmatprep.subr.mxu0 0.0
      %331 = vmatpush2.msra.mxu0 0.0
      %332 = vmatprep.subr.mxu0 0.0
      %333 = vmatpush2.msra.mxu0 0.0
      %334 = vmatprep.subr.mxu0 0.0
      %335 = vmatpush2.msra.mxu0 0.0
      %336 = vmatprep.subr.mxu0 0.0
      %337 = vmatpush2.msra.mxu0 0.0
      %338 = vmatprep.mubr.f32.mxu0 0.0
      %339 = vmatmul.mubr.f32.gmra.mxu0 %v272
      %v340 = vpop.f32.mrf.mxu0
      %v341 = vadd.f32 0.0, %v340
      %v342 = vpop.f32.mrf.mxu0
      %v343 = vadd.f32 0.0, %v342
      %344 = vdwg.mxu0
      %vm345 = vcmask 523264
      %346 = vst.msk [vmem:[%s246] sm:$0xff] %vm345, %v341
      %348 = vrot.lane.b32.xlu0 %v341, 64
      %v349 = vpop.permute.xlu0 %348
      %351 = vst.msk [vmem:[%s253] sm:$0xff] %vm345, %v349
      %352 = vst.msk [vmem:[%s260] sm:$0xff] %vm270, %v343
      %p353 = scmp.lt.s32.totalorder %s20, 1
      %s354 = scalar_select %p353, %s20, 1
      %p355 = scmp.lt.s32.totalorder %s21, 0
      %s356 = scalar_select %p355, %s21, 0
      %s357 = sadd.s32 %s356, %s354
      %s358 = smul.addr %s357, 8
      %s359 = scalar_lea.vmem %s2, %s358
      %p360 = scmp.lt.s32.totalorder %s20, 1
      %s361 = scalar_select %p360, %s20, 1
      %p362 = scmp.lt.s32.totalorder %s21, 0
      %s363 = scalar_select %p362, %s21, 0
      %s364 = sadd.s32 %s363, %s361
      %s365 = smul.addr %s364, 8
      %s366 = scalar_lea.vmem %s3, %s365
      %p367 = scmp.lt.s32.totalorder %s20, 1
      %s368 = scalar_select %p367, %s20, 1
      %p369 = scmp.lt.s32.totalorder %s21, 0
      %s370 = scalar_select %p369, %s21, 0
      %s371 = sadd.s32 %s370, %s368
      %s372 = smul.addr %s371, 8
      %s373 = scalar_lea.vmem %s4, %s372
      // Predicated region
      $region29: #{attention_forward.2} parent=27 // pred_check
        %p374 = pneg %p97
      $region30: #{attention_forward.2} parent=27 // pred_check_branch
        %376 = sbr.rel (%p374) target = $region32
      $region31: #{attention_forward.2} parent=27 // pred_region
        _
      $region32: #{attention_forward.2} parent=27 // pred_fallthru
        _
      // Predicated region
      $region33: #{attention_forward.2} parent=27 // pred_check
        %p377 = pneg %p125
      $region34: #{attention_forward.2} parent=27 // pred_check_branch
        %379 = sbr.rel (%p377) target = $region36
      $region35: #{attention_forward.2} parent=27 // pred_region
        _
      $region36: #{attention_forward.2} parent=27 // pred_fallthru
        _
      // Predicated region
      $region37: #{attention_forward.2} parent=27 // pred_check
        %p380 = pneg %p153
      $region38: #{attention_forward.2} parent=27 // pred_check_branch
        %382 = sbr.rel (%p380) target = $region40
      $region39: #{attention_forward.2} parent=27 // pred_region
        _
      $region40: #{attention_forward.2} parent=27 // pred_fallthru
        _
    $region28: #{attention_forward.2} parent=5 // pred_fallthru
      _
    %p383 = scmp.le.s32.totalorder 2, %s11
    // Predicated region
    $region41: #{attention_forward.2} parent=5 // pred_check
      %p384 = pneg %p383
    $region42: #{attention_forward.2} parent=5 // pred_check_branch
      %386 = sbr.rel (%p384) target = $region44
    $region43: #{attention_forward.2} parent=5 // pred_region
      %s387 = ssub.s32 %s11, 2
      // Predicated region
      $region45: #{attention_forward.2} parent=43 // pred_check
        %p388 = pneg %p103
      $region46: #{attention_forward.2} parent=43 // pred_check_branch
        %390 = sbr.rel (%p388) target = $region48
      $region47: #{attention_forward.2} parent=43 // pred_region
        %p391 = scmp.lt.s32.totalorder %s22, 1
        %s392 = scalar_select %p391, %s22, 1
        %p393 = scmp.lt.s32.totalorder %s23, 0
        %s394 = scalar_select %p393, %s23, 0
        %s395 = sadd.s32 %s394, %s392
        %s396 = smul.addr %s395, 8
        %s397 = scalar_lea.vmem %s2, %s396
      $region48: #{attention_forward.2} parent=43 // pred_fallthru
        _
      // Predicated region
      $region49: #{attention_forward.2} parent=43 // pred_check
        %p398 = pneg %p131
      $region50: #{attention_forward.2} parent=43 // pred_check_branch
        %400 = sbr.rel (%p398) target = $region52
      $region51: #{attention_forward.2} parent=43 // pred_region
        %p401 = scmp.lt.s32.totalorder %s22, 1
        %s402 = scalar_select %p401, %s22, 1
        %p403 = scmp.lt.s32.totalorder %s23, 0
        %s404 = scalar_select %p403, %s23, 0
        %s405 = sadd.s32 %s404, %s402
        %s406 = smul.addr %s405, 8
        %s407 = scalar_lea.vmem %s3, %s406
      $region52: #{attention_forward.2} parent=43 // pred_fallthru
        _
      // Predicated region
      $region53: #{attention_forward.2} parent=43 // pred_check
        %p408 = pneg %p159
      $region54: #{attention_forward.2} parent=43 // pred_check_branch
        %410 = sbr.rel (%p408) target = $region56
      $region55: #{attention_forward.2} parent=43 // pred_region
        %p411 = scmp.lt.s32.totalorder %s22, 1
        %s412 = scalar_select %p411, %s22, 1
        %p413 = scmp.lt.s32.totalorder %s23, 0
        %s414 = scalar_select %p413, %s23, 0
        %s415 = sadd.s32 %s414, %s412
        %s416 = smul.addr %s415, 8
        %s417 = scalar_lea.vmem %s4, %s416
      $region56: #{attention_forward.2} parent=43 // pred_fallthru
        _
    $region44: #{attention_forward.2} parent=5 // pred_fallthru
      _
  $region6: #{attention_forward.2} parent=0 // loop_footer
    %s15 = sadd.s32 1, %s11
  $region7: #{attention_forward.2} parent=0 // loop_footer_branch
    %10 = sbr.rel target = $region3
  $region8: #{attention_forward.2} parent=0 // loop_exit
    _

</llo_original>
